<compile_context>
chip_gen: v7x
topology: tpu7x:2x2x1
jax: 0.10.0
libtpu: 0.0.40
codegen_flags: <defaults>
</compile_context>

<pallas_src>
import functools

import jax
import jax.numpy as jnp
from jax.experimental import pallas as pl
from jax.experimental.pallas import tpu as pltpu


def _round_up(x, m):
    return ((x + m - 1) // m) * m


def _supcon_kernel(*refs, inv_temperature, use_mask, reduce_in_kernel):
    if use_mask:
        logits_ref, labels_ref, mask_ref, out_ref = refs
    else:
        logits_ref, labels_ref, out_ref = refs
        mask_ref = None

    x = logits_ref[...] * inv_temperature                    # [TB, C] f32
    lbl = labels_ref[...].astype(jnp.float32)                # bf16 -> f32

    # Row max: cancels exactly in the fused form, keeps exp() finite.
    m = jnp.max(x, axis=-1, keepdims=True)                   # [TB, 1]
    xm = x - m
    e = jnp.exp(xm)                                          # only [TB,C] transcendental
    if use_mask:
        e = e * mask_ref[...].astype(jnp.float32)
    sum_exp = jnp.sum(e, axis=-1, keepdims=True)             # [TB, 1]
    num = jnp.sum(lbl * xm, axis=-1, keepdims=True)          # sum(labels * (x - m))
    label_sum = jnp.sum(lbl, axis=-1, keepdims=True)

    # loss = -(sum(labels*x) - label_sum*log(sum_exp)) / clip(label_sum, 1)
    loss = (label_sum * jnp.log(sum_exp) - num) / jnp.maximum(label_sum, 1.0)

    if reduce_in_kernel:
        @pl.when(pl.program_id(0) == 0)
        def _():
            out_ref[...] = jnp.zeros_like(out_ref)
        out_ref[...] += jnp.sum(loss, axis=0, keepdims=True)  # (1,1) accumulator
    else:
        out_ref[...] = loss                                   # (TB, 1) per-sample


def supcon_loss(logits, labels, *, temperature=0.1, base_temperature=0.1,
                reduction='mean', mask=None, tile_b=None):
    """JAX/Pallas equivalent of SupConLoss.forward.

    NOTE: base_temperature is accepted for API parity but, exactly like the
    PyTorch reference forward, does not affect the result.
    """
    del base_temperature  # unused by the reference forward pass
    if reduction not in ('mean', 'sum', 'none', None):
        raise NotImplementedError(f'reduction: {reduction} not defined')

    logits = jnp.asarray(logits, jnp.float32)
    # labels / mask are 0/1 indicators -> bf16 is exact and halves their HBM bytes.
    labels = jnp.asarray(labels).astype(jnp.bfloat16)
    use_mask = mask is not None
    if use_mask:
        mask = jnp.asarray(mask).astype(jnp.bfloat16)

    bsz, n_class = logits.shape

    # Batch tile: multiple of 16 sublanes (covers f32 & bf16 tiling), capped so
    # double-buffered input tiles stay well inside scoped VMEM on v5e/v6e/v7x.
    row_bytes = n_class * (4 + 2 + (2 if use_mask else 0))
    vmem_budget = 8 * 1024 * 1024           # bytes for 2x double-buffered input tiles
    tile_cap = max(16, (vmem_budget // (2 * row_bytes)) // 16 * 16)
    if tile_b is None:
        tile_b = max(16, min(_round_up(bsz, 16), 1024, tile_cap))
    else:
        tile_b = max(16, (int(tile_b) // 16) * 16)

    padded_bsz = _round_up(bsz, tile_b)
    grid = (padded_bsz // tile_b,)

    pad = padded_bsz - bsz
    if pad:
        logits = jnp.pad(logits, ((0, pad), (0, 0)))
        labels = jnp.pad(labels, ((0, pad), (0, 0)))          # padded rows -> loss == 0
        if use_mask:
            mask = jnp.pad(mask, ((0, pad), (0, 0)), constant_values=1)

    in_specs = [pl.BlockSpec((tile_b, n_class), lambda i: (i, 0)),
                pl.BlockSpec((tile_b, n_class), lambda i: (i, 0))]
    inputs = [logits, labels]
    if use_mask:
        in_specs.append(pl.BlockSpec((tile_b, n_class), lambda i: (i, 0)))
        inputs.append(mask)

    reduce_in_kernel = reduction in ('mean', 'sum')
    if reduce_in_kernel:
        out_shape = jax.ShapeDtypeStruct((1, 1), jnp.float32)
        out_specs = pl.BlockSpec((1, 1), lambda i: (0, 0))     # VMEM-resident accumulator
        dim_sem = ("arbitrary",)                               # output revisited
        out_bytes = 4
    else:
        out_shape = jax.ShapeDtypeStruct((padded_bsz, 1), jnp.float32)
        out_specs = pl.BlockSpec((tile_b, 1), lambda i: (i, 0))
        dim_sem = ("parallel",)                                # independent batch tiles
        out_bytes = 4 * padded_bsz

    in_bytes = sum(int(a.size) * a.dtype.itemsize for a in inputs)
    cost = pl.CostEstimate(
        flops=int(7 * padded_bsz * n_class),
        transcendentals=int(padded_bsz * n_class + padded_bsz),
        bytes_accessed=int(in_bytes + out_bytes),
    )

    kernel = functools.partial(_supcon_kernel,
                               inv_temperature=float(1.0 / temperature),
                               use_mask=use_mask,
                               reduce_in_kernel=reduce_in_kernel)

    result = pl.pallas_call(
        kernel,
        out_shape=out_shape,
        grid_spec=pltpu.PrefetchScalarGridSpec(
            num_scalar_prefetch=0,
            grid=grid,
            in_specs=in_specs,
            out_specs=out_specs,
        ),
        compiler_params=pltpu.CompilerParams(
            dimension_semantics=dim_sem,
            vmem_limit_bytes=32 * 1024 * 1024,
        ),
        cost_estimate=cost,
    )(*inputs)

    if reduction == 'mean':
        return result[0, 0] / bsz
    elif reduction == 'sum':
        return result[0, 0]
    else:  # 'none' / None
        return result[:bsz, 0]


def _reference(logits, labels, temperature=0.1, mask=None, reduction='mean'):
    """Pure-JAX replica of the torch forward, for verification."""
    x = logits / temperature
    e = jnp.exp(x)
    if mask is not None:
        s = jnp.sum(e * mask, axis=-1)
    else:
        s = jnp.sum(e, axis=-1)
    p = e / s[:, None]
    lp = jnp.log(p) * labels
    slp = jnp.sum(lp, axis=-1)
    ln = jnp.maximum(jnp.sum(labels, axis=-1), 1.0)
    loss = -1.0 / ln * slp
    if reduction == 'mean':
        return jnp.mean(loss)
    elif reduction == 'sum':
        return jnp.sum(loss)
    return loss


if __name__ == "__main__":
    key = jax.random.PRNGKey(0)
    k1, k2, k3, k4, k5 = jax.random.split(key, 5)

    # Case 1: default path (mask=None, reduction='mean'); multi-tile batch with
    # row padding (bsz=200, tile_b=64 -> grid of 4, 56 padded rows).
    bsz, n_class = 200, 32
    logits = jax.random.normal(k1, (bsz, n_class), dtype=jnp.float32)
    cls = jax.random.randint(k2, (bsz,), 0, n_class)
    labels = jax.nn.one_hot(cls, n_class, dtype=jnp.float32)

    out = jax.block_until_ready(
        supcon_loss(logits, labels, temperature=0.1, reduction='mean', tile_b=64))
    ref = _reference(logits, labels, temperature=0.1, reduction='mean')
    assert jnp.allclose(out, ref, rtol=2e-5, atol=5e-4), (out, ref)

    # Case 2: per-sample losses (reduction='none'), parallel batch tiles.
    out_none = jax.block_until_ready(
        supcon_loss(logits, labels, temperature=0.1, reduction='none', tile_b=64))
    ref_none = _reference(logits, labels, temperature=0.1, reduction='none')
    assert out_none.shape == (bsz,)
    assert jnp.allclose(out_none, ref_none, rtol=2e-5, atol=5e-4)

    # Case 3: explicit mask + reduction='sum' (masked-denominator kernel variant).
    bsz2, n_class2 = 64, 40
    logits2 = jax.random.normal(k3, (bsz2, n_class2), dtype=jnp.float32)
    cls2 = jax.random.randint(k4, (bsz2,), 0, n_class2)
    labels2 = jax.nn.one_hot(cls2, n_class2, dtype=jnp.float32)
    mask2 = (jax.random.uniform(k5, (bsz2, n_class2)) > 0.3).astype(jnp.float32)
    mask2 = mask2.at[:, 0].set(1.0)   # keep every row's denominator non-empty
    out_sum = jax.block_until_ready(
        supcon_loss(logits2, labels2, temperature=0.1, reduction='sum', mask=mask2))
    ref_sum = _reference(logits2, labels2, temperature=0.1, mask=mask2, reduction='sum')
    assert jnp.allclose(out_sum, ref_sum, rtol=2e-5, atol=5e-3), (out_sum, ref_sum)

    print("KERNEL_OK")
</pallas_src>

<mosaic_0001>
module attributes {stable_mosaic.version = 11 : i64} {
  func.func @_supcon_kernel(%arg0: i32, %arg1: memref<64x32xf32, #tpu.memory_space<vmem>>, %arg2: memref<64x32xbf16, #tpu.memory_space<vmem>>, %arg3: memref<1x1xf32, #tpu.memory_space<vmem>>) attributes {dimension_semantics = [#tpu.dimension_semantics<arbitrary>], iteration_bounds = array<i64: 4>, scalar_prefetch = 0 : i64, scratch_operands = 0 : i64, tpu.core_type = #tpu.core_type<tc>, window_params = [{transform_indices = @transform_0, window_bounds = array<i64: 64, 32>}, {transform_indices = @transform_1, window_bounds = array<i64: 64, 32>}, {pipeline_mode = #tpu.pipeline_mode<synchronous>, transform_indices = @transform_2, window_bounds = array<i64: 1, 1>}]} {
    %c0 = arith.constant 0 : index
    %c0_0 = arith.constant 0 : index
    %0 = vector.load %arg1[%c0, %c0_0] : memref<64x32xf32, #tpu.memory_space<vmem>>, vector<64x32xf32>
    %cst = arith.constant 1.000000e+01 : f32
    %1 = vector.broadcast %cst : f32 to vector<64x32xf32>
    %2 = arith.mulf %0, %1 : vector<64x32xf32>
    %c0_1 = arith.constant 0 : index
    %c0_2 = arith.constant 0 : index
    %3 = vector.load %arg2[%c0_1, %c0_2] : memref<64x32xbf16, #tpu.memory_space<vmem>>, vector<64x32xbf16>
    %4 = arith.extf %3 : vector<64x32xbf16> to vector<64x32xf32>
    %cst_3 = arith.constant dense<0xFF800000> : vector<64xf32>
    %5 = vector.multi_reduction <maximumf>, %2, %cst_3 [1] : vector<64x32xf32> to vector<64xf32>
    %6 = vector.shape_cast %5 : vector<64xf32> to vector<64x1xf32>
    %7 = vector.broadcast %6 : vector<64x1xf32> to vector<64x32xf32>
    %8 = arith.subf %2, %7 : vector<64x32xf32>
    %9 = math.exp %8 : vector<64x32xf32>
    %cst_4 = arith.constant dense<0.000000e+00> : vector<64xf32>
    %10 = vector.multi_reduction <add>, %9, %cst_4 [1] : vector<64x32xf32> to vector<64xf32>
    %11 = vector.shape_cast %10 : vector<64xf32> to vector<64x1xf32>
    %12 = arith.mulf %4, %8 : vector<64x32xf32>
    %cst_5 = arith.constant dense<0.000000e+00> : vector<64xf32>
    %13 = vector.multi_reduction <add>, %12, %cst_5 [1] : vector<64x32xf32> to vector<64xf32>
    %14 = vector.shape_cast %13 : vector<64xf32> to vector<64x1xf32>
    %cst_6 = arith.constant dense<0.000000e+00> : vector<64xf32>
    %15 = vector.multi_reduction <add>, %4, %cst_6 [1] : vector<64x32xf32> to vector<64xf32>
    %16 = vector.shape_cast %15 : vector<64xf32> to vector<64x1xf32>
    %17 = math.log %11 : vector<64x1xf32>
    %18 = arith.mulf %16, %17 : vector<64x1xf32>
    %19 = arith.subf %18, %14 : vector<64x1xf32>
    %cst_7 = arith.constant 1.000000e+00 : f32
    %20 = vector.broadcast %cst_7 : f32 to vector<64x1xf32>
    %21 = arith.maximumf %16, %20 : vector<64x1xf32>
    %22 = arith.divf %19, %21 : vector<64x1xf32>
    %c0_i32 = arith.constant 0 : i32
    %23 = arith.cmpi eq, %arg0, %c0_i32 : i32
    %24 = arith.extui %23 : i1 to i32
    %c0_i32_8 = arith.constant 0 : i32
    %25 = arith.cmpi ne, %24, %c0_i32_8 : i32
    scf.if %25 {
      %cst_14 = arith.constant 0.000000e+00 : f32
      %31 = vector.broadcast %cst_14 : f32 to vector<1x1xf32>
      %c0_15 = arith.constant 0 : index
      %c0_16 = arith.constant 0 : index
      %32 = vector.load %arg3[%c0_15, %c0_16] : memref<1x1xf32, #tpu.memory_space<vmem>>, vector<1x1xf32>
      tpu.vector_store %arg3[%c0_15, %c0_16], %31 {strides = array<i32>} : memref<1x1xf32, #tpu.memory_space<vmem>>, vector<1x1xf32>,
    } else {
    }
    %c0_9 = arith.constant 0 : index
    %c0_10 = arith.constant 0 : index
    %26 = vector.load %arg3[%c0_9, %c0_10] : memref<1x1xf32, #tpu.memory_space<vmem>>, vector<1x1xf32>
    %cst_11 = arith.constant dense<0.000000e+00> : vector<1xf32>
    %27 = vector.multi_reduction <add>, %22, %cst_11 [0] : vector<64x1xf32> to vector<1xf32>
    %28 = vector.shape_cast %27 : vector<1xf32> to vector<1x1xf32>
    %29 = arith.addf %26, %28 : vector<1x1xf32>
    %c0_12 = arith.constant 0 : index
    %c0_13 = arith.constant 0 : index
    %30 = vector.load %arg3[%c0_12, %c0_13] : memref<1x1xf32, #tpu.memory_space<vmem>>, vector<1x1xf32>
    tpu.vector_store %arg3[%c0_12, %c0_13], %29 {strides = array<i32>} : memref<1x1xf32, #tpu.memory_space<vmem>>, vector<1x1xf32>,
    return
  }
  func.func @transform_0(%arg0: i32) -> (i32, i32) {
    %c0_i32 = arith.constant 0 : i32
    %c0_i32_0 = arith.constant 0 : i32
    return %arg0, %c0_i32 : i32, i32
  }
  func.func @transform_1(%arg0: i32) -> (i32, i32) {
    %c0_i32 = arith.constant 0 : i32
    %c0_i32_0 = arith.constant 0 : i32
    return %arg0, %c0_i32 : i32, i32
  }
  func.func @transform_2(%arg0: i32) -> (i32, i32) {
    %c0_i32 = arith.constant 0 : i32
    %c0_i32_0 = arith.constant 0 : i32
    %c0_i32_1 = arith.constant 0 : i32
    return %c0_i32, %c0_i32_0 : i32, i32
  }
}

</mosaic_0001>

<llo_original>
// kernel: tpu_custom_call.1
$region0: #{tpu_custom_call.1}
  #allocation0 [shape = 'u32[]', space=smem, size = 0x4, offset = 0x4, fixed_abs, tag = 'smem constant byte address 0x4 - core index']
  #allocation1 [shape = 'u32[144,128]{1,0:T(1,128)}', space=vmem, size = 0x12000, scoped, tag = 'internal scratch']
  %s0 = inlined_call_operand.vmem [shape: f32[256,32], index: 0, kind: input, shape index: {}]
  %s1 = inlined_call_operand.vmem [shape: bf16[256,32], index: 1, kind: input, shape index: {}]
  %s2 = inlined_call_operand.hbm [shape: f32[1,1], index: 2, kind: output, shape index: {}]
  %s3 = sld [smem:[#allocation0]]
  $region45: #{tpu_custom_call.1} parent=0
    _
  %s5 = ssub.s32 1, %s3
  %s6 = scalar_select 0, %s5, %s3
  $region1: #{tpu_custom_call.1} parent=0
    #allocation2 [shape = 'u8[512]{0}', space=vmem, size = 0x400, scoped, tag = 'output window, operand 0, single buffered']
    #allocation3 [shape = 's32[2]{0}', space=sflag, size = 0x8, scoped, tag = 'scoped memory for tpu_custom_call.1']
    %7 = vsyncpa [#allocation3], 0
    loop: start=0, step=1, limit=6
    $region2: #{tpu_custom_call.1} parent=1 // loop_pre_header
      _
    $region3: #{tpu_custom_call.1} parent=1 // loop_header
      %s9 = sphi 0, %s13
      %p10 = scmp.ge.s32.totalorder %s9, 6
      %s19 = sphi 0, %s21
      %s22 = sphi 0, %s19
      %s23 = sphi 0, %s22
      %s39 = sphi 0, %s23
      %s45 = sphi 0, %s47
      %s48 = sphi 0, %s45
      %s49 = sphi 0, %s48
      %s65 = sphi 0, %s49
      %s69 = sphi 0, %s69
      %s71 = sphi 0, %s69
      %s72 = sphi 0, %s71
      %s86 = sphi 0, %s72
    $region4: #{tpu_custom_call.1} parent=1 // loop_header_branch
      %12 = sbr.rel (%p10) target = $region8
    $region5: #{tpu_custom_call.1} parent=1 // loop_body
      %s14 = ssub.s32 %s9, 1
      %s15 = ssub.s32 %s9, 2
      %s16 = sadd.s32 %s9, 1
      %s17 = ssub.s32 %s9, %s16
      %p18 = scmp.eq.s32.totalorder %s17, 0
      %s20 = sadd.s32 %s19, 1
      %s21 = scalar_select %p18, %s19, %s20
      %p24 = pneg %p18
      %p25 = scmp.eq.s32.totalorder %s9, 3
      %p26 = por %p24, %p25
      %p27 = scmp.ne.s32.totalorder %s19, %s22
      %p28 = scmp.eq.s32.totalorder %s9, 0
      %p29 = por %p27, %p28
      %p30 = scmp.ne.s32.totalorder %s19, %s22
      %p31 = scmp.eq.s32.totalorder %s14, 3
      %p32 = por %p30, %p31
      %p33 = scmp.ne.s32.totalorder %s22, %s23
      %p34 = scmp.eq.s32.totalorder %s14, 0
      %p35 = por %p33, %p34
      %p36 = scmp.ne.s32.totalorder %s22, %s23
      %p37 = scmp.eq.s32.totalorder %s15, 3
      %p38 = por %p36, %p37
      %p40 = scmp.ne.s32.totalorder %s23, %s39
      %p41 = scmp.eq.s32.totalorder %s15, 0
      %p42 = por %p40, %p41
      %s43 = ssub.s32 %s9, %s16
      %p44 = scmp.eq.s32.totalorder %s43, 0
      %s46 = sadd.s32 %s45, 1
      %s47 = scalar_select %p44, %s45, %s46
      %p50 = pneg %p44
      %p51 = scmp.eq.s32.totalorder %s9, 3
      %p52 = por %p50, %p51
      %p53 = scmp.ne.s32.totalorder %s45, %s48
      %p54 = scmp.eq.s32.totalorder %s9, 0
      %p55 = por %p53, %p54
      %p56 = scmp.ne.s32.totalorder %s45, %s48
      %p57 = scmp.eq.s32.totalorder %s14, 3
      %p58 = por %p56, %p57
      %p59 = scmp.ne.s32.totalorder %s48, %s49
      %p60 = scmp.eq.s32.totalorder %s14, 0
      %p61 = por %p59, %p60
      %p62 = scmp.ne.s32.totalorder %s48, %s49
      %p63 = scmp.eq.s32.totalorder %s15, 3
      %p64 = por %p62, %p63
      %p66 = scmp.ne.s32.totalorder %s49, %s65
      %p67 = scmp.eq.s32.totalorder %s15, 0
      %p68 = por %p66, %p67
      %s70 = sadd.s32 %s69, 1
      %p73 = scmp.eq.s32.totalorder %s9, 3
      %p74 = scmp.ne.s32.totalorder %s69, %s71
      %p75 = scmp.eq.s32.totalorder %s9, 0
      %p76 = por %p74, %p75
      %p77 = scmp.ne.s32.totalorder %s69, %s71
      %p78 = scmp.eq.s32.totalorder %s14, 3
      %p79 = por %p77, %p78
      %p80 = scmp.ne.s32.totalorder %s71, %s72
      %p81 = scmp.eq.s32.totalorder %s14, 0
      %p82 = por %p80, %p81
      %p83 = scmp.ne.s32.totalorder %s71, %s72
      %p84 = scmp.eq.s32.totalorder %s15, 3
      %p85 = por %p83, %p84
      %p87 = scmp.ne.s32.totalorder %s72, %s86
      %p88 = scmp.eq.s32.totalorder %s15, 0
      %p89 = por %p87, %p88
      %p90 = scmp.le.s32.totalorder 1, %s9
      %p91 = scmp.lt.s32.totalorder %s9, 5
      %p92 = pnand %p90, %p91
      %p93 = pneg %p92
      // Predicated region
      $region9: #{tpu_custom_call.1} parent=5 // pred_check
        _
      $region10: #{tpu_custom_call.1} parent=5 // pred_check_branch
        %95 = sbr.rel (%p92) target = $region12
      $region11: #{tpu_custom_call.1} parent=5 // pred_region
        %s96 = ssub.s32 %s9, 1
      $region12: #{tpu_custom_call.1} parent=5 // pred_fallthru
        _
      %p97 = scmp.lt.s32.totalorder %s9, 4
      // Predicated region
      $region13: #{tpu_custom_call.1} parent=5 // pred_check
        %p98 = pneg %p97
      $region14: #{tpu_custom_call.1} parent=5 // pred_check_branch
        %100 = sbr.rel (%p98) target = $region16
      $region15: #{tpu_custom_call.1} parent=5 // pred_region
        // Predicated region
        $region17: #{tpu_custom_call.1} parent=15 // pred_check
          %p101 = pneg %p29
        $region18: #{tpu_custom_call.1} parent=15 // pred_check_branch
          %103 = sbr.rel (%p101) target = $region20
        $region19: #{tpu_custom_call.1} parent=15 // pred_region
          %s104 = smul.u32 8, %s9
          %p105 = scmp.lt.s32.totalorder %s104, 31
          %s106 = scalar_select %p105, %s104, 31
          %s107 = smul.addr %s106, 8
          %s108 = scalar_lea.vmem %s0, %s107
          %s109 = smul.u32 8, %s9
        $region20: #{tpu_custom_call.1} parent=15 // pred_fallthru
          _
        // Predicated region
        $region21: #{tpu_custom_call.1} parent=15 // pred_check
          %p110 = pneg %p55
        $region22: #{tpu_custom_call.1} parent=15 // pred_check_branch
          %112 = sbr.rel (%p110) target = $region24
        $region23: #{tpu_custom_call.1} parent=15 // pred_region
          %s113 = smul.u32 8, %s9
          %p114 = scmp.lt.s32.totalorder %s113, 31
          %s115 = scalar_select %p114, %s113, 31
          %s116 = smul.addr %s115, 4
          %s117 = scalar_lea.vmem %s1, %s116
          %s118 = smul.u32 8, %s9
        $region24: #{tpu_custom_call.1} parent=15 // pred_fallthru
          _
      $region16: #{tpu_custom_call.1} parent=5 // pred_fallthru
        _
      %p119 = scmp.le.s32.totalorder 1, %s9
      %p120 = scmp.lt.s32.totalorder %s9, 5
      %p121 = pnand %p119, %p120
      %p122 = pneg %p121
      // Predicated region
      $region25: #{tpu_custom_call.1} parent=5 // pred_check
        _
      $region26: #{tpu_custom_call.1} parent=5 // pred_check_branch
        %124 = sbr.rel (%p121) target = $region28
      $region27: #{tpu_custom_call.1} parent=5 // pred_region
        %s125 = ssub.s32 %s9, 1
        %s126 = smul.u32 8, %s14
        %p127 = scmp.lt.s32.totalorder %s126, 31
        %s128 = scalar_select %p127, %s126, 31
        %s129 = smul.addr %s128, 8
        %s130 = scalar_lea.vmem %s0, %s129
        %p131 = pneg %p35
        %p132 = pneg %p32
        %s133 = smul.u32 8, %s14
        %p134 = scmp.lt.s32.totalorder %s133, 31
        %s135 = scalar_select %p134, %s133, 31
        %s136 = smul.addr %s135, 4
        %s137 = scalar_lea.vmem %s1, %s136
        %p138 = pneg %p61
        %p139 = pneg %p58
        %p140 = pneg %p82
        %p141 = pneg %p79
        %s142 = smul.u32 8, %s14
        %p143 = scmp.lt.s32.totalorder %s142, 31
        %s144 = scalar_select %p143, %s142, 31
        %s145 = smul.addr %s144, 8
        %s146 = scalar_lea.vmem %s0, %s145
        %s147 = smul.u32 8, %s14
        %s148 = smul.u32 8, %s14
        %p149 = scmp.lt.s32.totalorder %s148, 31
        %s150 = scalar_select %p149, %s148, 31
        %s151 = smul.addr %s150, 4
        %s152 = scalar_lea.vmem %s1, %s151
        %s153 = smul.u32 8, %s14
        %v154 = vld [vmem:[%s146] sm:$0xff]
        %v155 = vld [vmem:[%s146 + $0x8] sm:$0xff]
        %v156 = vld [vmem:[%s146 + $0x10] sm:$0xff]
        %v157 = vld [vmem:[%s146 + $0x18] sm:$0xff]
        %v158 = vld [vmem:[%s146 + $0x20] sm:$0xff]
        %v159 = vld [vmem:[%s146 + $0x28] sm:$0xff]
        %v160 = vld [vmem:[%s146 + $0x30] sm:$0xff]
        %v161 = vld [vmem:[%s146 + $0x38] sm:$0xff]
        %v162 = vmul.f32 %v154, 10.0
        %v163 = vmul.f32 %v155, 10.0
        %v164 = vmul.f32 %v156, 10.0
        %v165 = vmul.f32 %v157, 10.0
        %v166 = vmul.f32 %v158, 10.0
        %v167 = vmul.f32 %v159, 10.0
        %v168 = vmul.f32 %v160, 10.0
        %v169 = vmul.f32 %v161, 10.0
        %v170 = vld [vmem:[%s152] sm:$0xf]
        %v171 = vld [vmem:[%s152 + $0x4] sm:$0xf]
        %v172 = vld [vmem:[%s152 + $0x8] sm:$0xf]
        %v173 = vld [vmem:[%s152 + $0xc] sm:$0xf]
        %v174 = vld [vmem:[%s152 + $0x10] sm:$0xf]
        %v175 = vld [vmem:[%s152 + $0x14] sm:$0xf]
        %v176 = vld [vmem:[%s152 + $0x18] sm:$0xf]
        %v177 = vld [vmem:[%s152 + $0x1c] sm:$0xf]
        %v178 = vunpack.c.l.bf16 %v170
        %v179 = vunpack.c.l.bf16 %v171
        %v180 = vunpack.c.l.bf16 %v172
        %v181 = vunpack.c.l.bf16 %v173
        %v182 = vunpack.c.l.bf16 %v174
        %v183 = vunpack.c.l.bf16 %v175
        %v184 = vunpack.c.l.bf16 %v176
        %v185 = vunpack.c.l.bf16 %v177
        %vm186 = vcmask 261120
        %v187 = vsel %vm186, %v162, -inf
        %188 = vmax.xlane.f32.xlu0 %v187
        %v189 = vpop.xlane.xlu0 %188
        %v190 = vsel %vm186, %v163, -inf
        %191 = vmax.xlane.f32.xlu0 %v190
        %v192 = vpop.xlane.xlu0 %191
        %v193 = vsel %vm186, %v164, -inf
        %194 = vmax.xlane.f32.xlu0 %v193
        %v195 = vpop.xlane.xlu0 %194
        %v196 = vsel %vm186, %v165, -inf
        %197 = vmax.xlane.f32.xlu0 %v196
        %v198 = vpop.xlane.xlu0 %197
        %v199 = vsel %vm186, %v166, -inf
        %200 = vmax.xlane.f32.xlu0 %v199
        %v201 = vpop.xlane.xlu0 %200
        %v202 = vsel %vm186, %v167, -inf
        %203 = vmax.xlane.f32.xlu0 %v202
        %v204 = vpop.xlane.xlu0 %203
        %v205 = vsel %vm186, %v168, -inf
        %206 = vmax.xlane.f32.xlu0 %v205
        %v207 = vpop.xlane.xlu0 %206
        %v208 = vsel %vm186, %v169, -inf
        %209 = vmax.xlane.f32.xlu0 %v208
        %v210 = vpop.xlane.xlu0 %209
        %v211 = vsub.f32 %v162, %v189
        %v212 = vsub.f32 %v163, %v192
        %v213 = vsub.f32 %v164, %v195
        %v214 = vsub.f32 %v165, %v198
        %v215 = vsub.f32 %v166, %v201
        %v216 = vsub.f32 %v167, %v204
        %v217 = vsub.f32 %v168, %v207
        %v218 = vsub.f32 %v169, %v210
        %v219 = vmul.f32 %v211, 1.442695
        %v220 = vpow.pop %v219
        %v221 = vmul.f32 %v212, 1.442695
        %v222 = vpow.pop %v221
        %v223 = vmul.f32 %v213, 1.442695
        %v224 = vpow.pop %v223
        %v225 = vmul.f32 %v214, 1.442695
        %v226 = vpow.pop %v225
        %v227 = vmul.f32 %v215, 1.442695
        %v228 = vpow.pop %v227
        %v229 = vmul.f32 %v216, 1.442695
        %v230 = vpow.pop %v229
        %v231 = vmul.f32 %v217, 1.442695
        %v232 = vpow.pop %v231
        %v233 = vmul.f32 %v218, 1.442695
        %v234 = vpow.pop %v233
        %v235 = vsel %vm186, %v220, 0.0
        %236 = vadd.xlane.f32.xlu0 %v235
        %v237 = vpop.xlane.xlu0 %236
        %v238 = vsel %vm186, %v222, 0.0
        %239 = vadd.xlane.f32.xlu0 %v238
        %v240 = vpop.xlane.xlu0 %239
        %v241 = vsel %vm186, %v224, 0.0
        %242 = vadd.xlane.f32.xlu0 %v241
        %v243 = vpop.xlane.xlu0 %242
        %v244 = vsel %vm186, %v226, 0.0
        %245 = vadd.xlane.f32.xlu0 %v244
        %v246 = vpop.xlane.xlu0 %245
        %v247 = vsel %vm186, %v228, 0.0
        %248 = vadd.xlane.f32.xlu0 %v247
        %v249 = vpop.xlane.xlu0 %248
        %v250 = vsel %vm186, %v230, 0.0
        %251 = vadd.xlane.f32.xlu0 %v250
        %v252 = vpop.xlane.xlu0 %251
        %v253 = vsel %vm186, %v232, 0.0
        %254 = vadd.xlane.f32.xlu0 %v253
        %v255 = vpop.xlane.xlu0 %254
        %v256 = vsel %vm186, %v234, 0.0
        %257 = vadd.xlane.f32.xlu0 %v256
        %v258 = vpop.xlane.xlu0 %257
        %v259 = vmul.f32 %v178, %v211
        %v260 = vmul.f32 %v179, %v212
        %v261 = vmul.f32 %v180, %v213
        %v262 = vmul.f32 %v181, %v214
        %v263 = vmul.f32 %v182, %v215
        %v264 = vmul.f32 %v183, %v216
        %v265 = vmul.f32 %v184, %v217
        %v266 = vmul.f32 %v185, %v218
        %v267 = vsel %vm186, %v259, 0.0
        %268 = vadd.xlane.f32.xlu0 %v267
        %v269 = vpop.xlane.xlu0 %268
        %v270 = vsel %vm186, %v260, 0.0
        %271 = vadd.xlane.f32.xlu0 %v270
        %v272 = vpop.xlane.xlu0 %271
        %v273 = vsel %vm186, %v261, 0.0
        %274 = vadd.xlane.f32.xlu0 %v273
        %v275 = vpop.xlane.xlu0 %274
        %v276 = vsel %vm186, %v262, 0.0
        %277 = vadd.xlane.f32.xlu0 %v276
        %v278 = vpop.xlane.xlu0 %277
        %v279 = vsel %vm186, %v263, 0.0
        %280 = vadd.xlane.f32.xlu0 %v279
        %v281 = vpop.xlane.xlu0 %280
        %v282 = vsel %vm186, %v264, 0.0
        %283 = vadd.xlane.f32.xlu0 %v282
        %v284 = vpop.xlane.xlu0 %283
        %v285 = vsel %vm186, %v265, 0.0
        %286 = vadd.xlane.f32.xlu0 %v285
        %v287 = vpop.xlane.xlu0 %286
        %v288 = vsel %vm186, %v266, 0.0
        %289 = vadd.xlane.f32.xlu0 %v288
        %v290 = vpop.xlane.xlu0 %289
        %v291 = vsel %vm186, %v178, 0.0
        %292 = vadd.xlane.f32.xlu0 %v291
        %v293 = vpop.xlane.xlu0 %292
        %v294 = vsel %vm186, %v179, 0.0
        %295 = vadd.xlane.f32.xlu0 %v294
        %v296 = vpop.xlane.xlu0 %295
        %v297 = vsel %vm186, %v180, 0.0
        %298 = vadd.xlane.f32.xlu0 %v297
        %v299 = vpop.xlane.xlu0 %298
        %v300 = vsel %vm186, %v181, 0.0
        %301 = vadd.xlane.f32.xlu0 %v300
        %v302 = vpop.xlane.xlu0 %301
        %v303 = vsel %vm186, %v182, 0.0
        %304 = vadd.xlane.f32.xlu0 %v303
        %v305 = vpop.xlane.xlu0 %304
        %v306 = vsel %vm186, %v183, 0.0
        %307 = vadd.xlane.f32.xlu0 %v306
        %v308 = vpop.xlane.xlu0 %307
        %v309 = vsel %vm186, %v184, 0.0
        %310 = vadd.xlane.f32.xlu0 %v309
        %v311 = vpop.xlane.xlu0 %310
        %v312 = vsel %vm186, %v185, 0.0
        %313 = vadd.xlane.f32.xlu0 %v312
        %v314 = vpop.xlane.xlu0 %313
        %v315 = vlog2.pop %v237
        %v316 = vmul.f32 %v315, 0.6931472
        %v317 = vlog2.pop %v240
        %v318 = vmul.f32 %v317, 0.6931472
        %v319 = vlog2.pop %v243
        %v320 = vmul.f32 %v319, 0.6931472
        %v321 = vlog2.pop %v246
        %v322 = vmul.f32 %v321, 0.6931472
        %v323 = vlog2.pop %v249
        %v324 = vmul.f32 %v323, 0.6931472
        %v325 = vlog2.pop %v252
        %v326 = vmul.f32 %v325, 0.6931472
        %v327 = vlog2.pop %v255
        %v328 = vmul.f32 %v327, 0.6931472
        %v329 = vlog2.pop %v258
        %v330 = vmul.f32 %v329, 0.6931472
        %v331 = vmul.f32 %v293, %v316
        %v332 = vmul.f32 %v296, %v318
        %v333 = vmul.f32 %v299, %v320
        %v334 = vmul.f32 %v302, %v322
        %v335 = vmul.f32 %v305, %v324
        %v336 = vmul.f32 %v308, %v326
        %v337 = vmul.f32 %v311, %v328
        %v338 = vmul.f32 %v314, %v330
        %v339 = vsub.f32 %v331, %v269
        %v340 = vsub.f32 %v332, %v272
        %v341 = vsub.f32 %v333, %v275
        %v342 = vsub.f32 %v334, %v278
        %v343 = vsub.f32 %v335, %v281
        %v344 = vsub.f32 %v336, %v284
        %v345 = vsub.f32 %v337, %v287
        %v346 = vsub.f32 %v338, %v290
        %v347 = vmax.f32 %v293, 1.0
        %v348 = vmax.f32 %v296, 1.0
        %v349 = vmax.f32 %v299, 1.0
        %v350 = vmax.f32 %v302, 1.0
        %v351 = vmax.f32 %v305, 1.0
        %v352 = vmax.f32 %v308, 1.0
        %v353 = vmax.f32 %v311, 1.0
        %v354 = vmax.f32 %v314, 1.0
        %v355 = vrcp.pop %v347
        %v356 = vmul.f32 %v339, %v355
        %v357 = vrcp.pop %v348
        %v358 = vmul.f32 %v340, %v357
        %v359 = vrcp.pop %v349
        %v360 = vmul.f32 %v341, %v359
        %v361 = vrcp.pop %v350
        %v362 = vmul.f32 %v342, %v361
        %v363 = vrcp.pop %v351
        %v364 = vmul.f32 %v343, %v363
        %v365 = vrcp.pop %v352
        %v366 = vmul.f32 %v344, %v365
        %v367 = vrcp.pop %v353
        %v368 = vmul.f32 %v345, %v367
        %v369 = vrcp.pop %v354
        %v370 = vmul.f32 %v346, %v369
        %p371 = scmp.eq.s32.totalorder %s14, 0
        // Predicated region
        $region29: #{tpu_custom_call.1} parent=27 // pred_check
          %p372 = pneg %p371
        $region30: #{tpu_custom_call.1} parent=27 // pred_check_branch
          %374 = sbr.rel (%p372) target = $region32
        $region31: #{tpu_custom_call.1} parent=27 // pred_region
          %vm375 = vcmask 0
          %376 = vst.msk [vmem:[#allocation2] sm:$0x1] %vm375, 0.0
        $region32: #{tpu_custom_call.1} parent=27 // pred_fallthru
          _
        %v377 = vld [vmem:[#allocation2] sm:$0x1]
        %v378 = vadd.f32 %v356, %v358
        %v379 = vadd.f32 %v378, %v360
        %v380 = vadd.f32 %v379, %v362
        %v381 = vadd.f32 %v380, %v364
        %v382 = vadd.f32 %v381, %v366
        %v383 = vadd.f32 %v382, %v368
        %v384 = vadd.f32 %v383, %v370
        %v385 = vrot.slane %v384, 4
        %v386 = vadd.f32 %v384, %v385
        %v387 = vrot.slane %v386, 2
        %v388 = vadd.f32 %v386, %v387
        %v389 = vrot.slane %v388, 1
        %v390 = vadd.f32 %v388, %v389
        %v391 = vadd.f32 %v377, %v390
        %vm392 = vcmask 0
        %393 = vst.msk [vmem:[#allocation2] sm:$0x1] %vm392, %v391
        // Predicated region
        $region33: #{tpu_custom_call.1} parent=27 // pred_check
          %p394 = pneg %p79
        $region34: #{tpu_custom_call.1} parent=27 // pred_check_branch
          %396 = sbr.rel (%p394) target = $region36
        $region35: #{tpu_custom_call.1} parent=27 // pred_region
          %s398 = ssub.s32 16, 16
          %399 = vsyncadd [#allocation3], %s398
          %s401 = sshll.u32 [#allocation2], 4
          %s402 = int_to_ptr.vmem [resolvable:$true] %s401
          %404 = dma.vmem_to_hbm [thread:$0]  %s402, 16, %s2, [#allocation3]
        $region36: #{tpu_custom_call.1} parent=27 // pred_fallthru
          _
        // Predicated region
        $region37: #{tpu_custom_call.1} parent=27 // pred_check
          %p405 = pneg %p79
        $region38: #{tpu_custom_call.1} parent=27 // pred_check_branch
          %407 = sbr.rel (%p405) target = $region40
        $region39: #{tpu_custom_call.1} parent=27 // pred_region
          %408 = dma.done [#allocation3], 16
        $region40: #{tpu_custom_call.1} parent=27 // pred_fallthru
          _
      $region28: #{tpu_custom_call.1} parent=5 // pred_fallthru
        _
      %p409 = scmp.le.s32.totalorder 2, %s9
      // Predicated region
      $region41: #{tpu_custom_call.1} parent=5 // pred_check
        %p410 = pneg %p409
      $region42: #{tpu_custom_call.1} parent=5 // pred_check_branch
        %412 = sbr.rel (%p410) target = $region44
      $region43: #{tpu_custom_call.1} parent=5 // pred_region
        %s413 = ssub.s32 %s9, 2
      $region44: #{tpu_custom_call.1} parent=5 // pred_fallthru
        _
    $region6: #{tpu_custom_call.1} parent=1 // loop_footer
      %s13 = sadd.s32 1, %s9
    $region7: #{tpu_custom_call.1} parent=1 // loop_footer_branch
      %8 = sbr.rel target = $region3
    $region8: #{tpu_custom_call.1} parent=1 // loop_exit
      _
    %414 = vsyncpa [#allocation3], 1
    %s415 = scalar_lea.sflag [#allocation3], 1
    %416 = vsyncpa %s415, 1

</llo_original>
